<compile_context>
chip_gen: v5e
topology: v5e:2x2
jax: 0.10.0
libtpu: 0.0.40
codegen_flags: <defaults>
</compile_context>

<pallas_src>
from functools import partial

import numpy as np
import jax
import jax.numpy as jnp
from jax.experimental import pallas as pl
from jax.experimental.pallas import tpu as pltpu


# ----------------------------------------------------------------------------
# Constant construction (mirrors DCT_mat / generate_filter in the PyTorch code)
# ----------------------------------------------------------------------------
def dct_mat(size):
    m = np.zeros((size, size), dtype=np.float64)
    for i in range(size):
        for j in range(size):
            scale = np.sqrt(1.0 / size) if i == 0 else np.sqrt(2.0 / size)
            m[i, j] = scale * np.cos((j + 0.5) * np.pi * i / size)
    return m.astype(np.float32)


def generate_filter(start, end, size):
    return np.array(
        [[0.0 if (i + j > end or i + j <= start) else 1.0 for j in range(size)]
         for i in range(size)],
        dtype=np.float32,
    )


def norm_sigma(x):
    return 2.0 * jax.nn.sigmoid(x) - 1.0


# ----------------------------------------------------------------------------
# FAD_Head kernel: grid step = (image i, band filter f)
# ----------------------------------------------------------------------------
def _fad_kernel(x_ref, d_ref, dt_ref, filt_ref, out_ref, g_ref):
    # x_ref    : (C*S, S) bf16   image i, channels row-stacked
    # d_ref    : (S, S)   bf16   D
    # dt_ref   : (S, S)   bf16   D^T
    # filt_ref : (S, S)   bf16   filter f (base + 2*sigmoid(w) - 1)
    # out_ref  : (C*S, S) out_dtype   y_f for image i, channels row-stacked
    # g_ref    : (C*S, S) bf16 scratch, persistent across the filter axis
    cs, s = x_ref.shape
    c = cs // s
    f = pl.program_id(1)

    d = d_ref[...]        # D
    dt = dt_ref[...]      # D^T

    # Forward DCT once per image (filter axis is "arbitrary", iterated last):
    # g[c] = D @ x[c] @ D^T, stored bf16 and reused for all 4 filters.
    @pl.when(f == 0)
    def _():
        for ci in range(c):
            x_c = x_ref[pl.ds(ci * s, s), :]
            t = jnp.dot(d, x_c, preferred_element_type=jnp.float32)
            t = t.astype(jnp.bfloat16)
            xf_c = jnp.dot(t, dt, preferred_element_type=jnp.float32)
            g_ref[pl.ds(ci * s, s), :] = xf_c.astype(jnp.bfloat16)

    # Apply filter f and inverse DCT: y[c] = D^T @ (filt_f * x_freq[c]) @ D.
    filt_f = filt_ref[...]
    for ci in range(c):
        p_c = filt_f * g_ref[pl.ds(ci * s, s), :]          # bf16 Hadamard
        t = jnp.dot(dt, p_c, preferred_element_type=jnp.float32)
        t = t.astype(jnp.bfloat16)
        y_c = jnp.dot(t, d, preferred_element_type=jnp.float32)
        out_ref[pl.ds(ci * s, s), :] = y_c.astype(out_ref.dtype)


# ----------------------------------------------------------------------------
# Wrapper
# ----------------------------------------------------------------------------
@partial(jax.jit, static_argnames=("out_dtype",))
def fad_head(x, dct, dct_t, base_filters, learnable, out_dtype=jnp.bfloat16):
    """Pallas FAD_Head forward: (N, C, S, S) f32 -> (N, 4*C, S, S) out_dtype."""
    n, c, s, _ = x.shape
    nf = base_filters.shape[0]

    # Hoisted, image-independent filter computation (once per call, not per step),
    # shipped to the kernel as bf16 ({0,1} + (-1,1) values: bf16 is plenty).
    filt = (base_filters + norm_sigma(learnable)).astype(jnp.bfloat16)  # (nf,S,S)

    # bf16 MXU operands (f32 accumulation inside the kernel); channel dim is
    # row-stacked in the wrapper so the kernel sees a 2-D (C*S, S) block.
    x_rows = x.astype(jnp.bfloat16).reshape(n, c * s, s)
    d16 = dct.astype(jnp.bfloat16)
    dt16 = dct_t.astype(jnp.bfloat16)

    out = pl.pallas_call(
        _fad_kernel,
        grid=(n, nf),
        in_specs=[
            pl.BlockSpec((None, c * s, s), lambda i, f: (i, 0, 0)),   # x (per image)
            pl.BlockSpec((s, s), lambda i, f: (0, 0)),                # D (invariant)
            pl.BlockSpec((s, s), lambda i, f: (0, 0)),                # D^T (invariant)
            pl.BlockSpec((None, s, s), lambda i, f: (f, 0, 0)),       # filter f
        ],
        out_specs=pl.BlockSpec((None, None, c * s, s), lambda i, f: (i, f, 0, 0)),
        out_shape=jax.ShapeDtypeStruct((n, nf, c * s, s), out_dtype),
        scratch_shapes=[pltpu.VMEM((c * s, s), jnp.bfloat16)],        # x_freq, per image
        compiler_params=pltpu.CompilerParams(
            dimension_semantics=("parallel", "arbitrary")),
    )(x_rows, d16, dt16, filt)

    # Free HBM reinterpretation back to the PyTorch layout (N, 4*C, S, S):
    # out[n, f, c] == y_f[n, c], matching torch.cat([y0..y3], dim=1).
    return out.reshape(n, nf * c, s, s)


# ----------------------------------------------------------------------------
# Pure-JAX float32 reference (mirrors the PyTorch module exactly)
# ----------------------------------------------------------------------------
def fad_head_ref(x, dct, dct_t, base_filters, learnable):
    x_freq = jnp.einsum('ij,ncjk->ncik', dct, x)
    x_freq = jnp.einsum('ncik,kl->ncil', x_freq, dct_t)
    ys = []
    for f in range(base_filters.shape[0]):
        filt = base_filters[f] + norm_sigma(learnable[f])
        xp = x_freq * filt
        y = jnp.einsum('ij,ncjk->ncik', dct_t, xp)
        y = jnp.einsum('ncik,kl->ncil', y, dct)
        ys.append(y)
    return jnp.concatenate(ys, axis=1)


# ----------------------------------------------------------------------------
# Run at small synthetic shapes.
# ----------------------------------------------------------------------------
if __name__ == "__main__":
    IMG, C, N = 16, 3, 2          # real F3Net uses IMG=299, C=3

    key = jax.random.PRNGKey(0)
    k_x, k_w = jax.random.split(key)
    x = jax.random.normal(k_x, (N, C, IMG, IMG), jnp.float32)   # NCHW

    # FAD_Head constants / parameters (matching the PyTorch constructor).
    dct = jnp.asarray(dct_mat(IMG))
    dct_t = jnp.asarray(dct_mat(IMG).T)
    bands = [(0, IMG // 16), (IMG // 16, IMG // 8), (IMG // 8, IMG), (0, IMG * 2)]
    base_filters = jnp.asarray(
        np.stack([generate_filter(lo, hi, IMG) for lo, hi in bands]))
    learnable = 0.1 * jax.random.normal(k_w, (4, IMG, IMG), jnp.float32)

    out = jax.block_until_ready(fad_head(x, dct, dct_t, base_filters, learnable))
    ref = fad_head_ref(x, dct, dct_t, base_filters, learnable)

    assert out.shape == (N, 4 * C, IMG, IMG), out.shape
    assert out.dtype == jnp.bfloat16, out.dtype
    out_f32 = out.astype(jnp.float32)
    assert bool(jnp.all(jnp.isfinite(out_f32)))
    # bf16 operands/intermediates/output with f32 accumulation -> small bounded
    # deviation from the pure-f32 reference; a structural bug gives O(1) errors.
    err = float(jnp.max(jnp.abs(out_f32 - ref)))
    scale = float(jnp.max(jnp.abs(ref)))
    assert err <= 0.05 * scale + 0.05, (err, scale)
    print("KERNEL_OK")
</pallas_src>

<mosaic_0001>
module attributes {stable_mosaic.version = 11 : i64} {
  func.func @_fad_kernel(%arg0: i32, %arg1: i32, %arg2: memref<1x48x16xbf16, #tpu.memory_space<vmem>>, %arg3: memref<16x16xbf16, #tpu.memory_space<vmem>>, %arg4: memref<16x16xbf16, #tpu.memory_space<vmem>>, %arg5: memref<1x16x16xbf16, #tpu.memory_space<vmem>>, %arg6: memref<1x1x48x16xbf16, #tpu.memory_space<vmem>>, %arg7: memref<48x16xbf16, #tpu.memory_space<vmem>>) attributes {dimension_semantics = [#tpu.dimension_semantics<parallel>, #tpu.dimension_semantics<arbitrary>], iteration_bounds = array<i64: 2, 4>, scalar_prefetch = 0 : i64, scratch_operands = 1 : i64, tpu.core_type = #tpu.core_type<tc>, window_params = [{transform_indices = @transform_0, window_bounds = array<i64: 1, 48, 16>}, {pipeline_mode = #tpu.pipeline_mode<synchronous>, transform_indices = @transform_1, window_bounds = array<i64: 16, 16>}, {pipeline_mode = #tpu.pipeline_mode<synchronous>, transform_indices = @transform_2, window_bounds = array<i64: 16, 16>}, {transform_indices = @transform_3, window_bounds = array<i64: 1, 16, 16>}, {transform_indices = @transform_4, window_bounds = array<i64: 1, 1, 48, 16>}]} {
    %c0 = arith.constant 0 : index
    %c0_0 = arith.constant 0 : index
    %0 = vector.load %arg3[%c0, %c0_0] : memref<16x16xbf16, #tpu.memory_space<vmem>>, vector<16x16xbf16>
    %c0_1 = arith.constant 0 : index
    %c0_2 = arith.constant 0 : index
    %1 = vector.load %arg4[%c0_1, %c0_2] : memref<16x16xbf16, #tpu.memory_space<vmem>>, vector<16x16xbf16>
    %c0_i32 = arith.constant 0 : i32
    %2 = arith.cmpi eq, %arg1, %c0_i32 : i32
    %3 = arith.extui %2 : i1 to i32
    %c0_i32_3 = arith.constant 0 : i32
    %4 = arith.cmpi ne, %3, %c0_i32_3 : i32
    scf.if %4 {
      %c0_28 = arith.constant 0 : index
      %c0_29 = arith.constant 0 : index
      %c0_30 = arith.constant 0 : index
      %34 = vector.load %arg2[%c0_28, %c0_29, %c0_30] : memref<1x48x16xbf16, #tpu.memory_space<vmem>>, vector<1x16x16xbf16>
      %35 = vector.shape_cast %34 : vector<1x16x16xbf16> to vector<16x16xbf16>
      %cst_31 = arith.constant dense<0.000000e+00> : vector<16x16xf32>
      %36 = tpu.matmul %0, %35, %cst_31 {dimension_numbers = #tpu.dot_dimension_numbers<[1], [0], [0], [1], [0, 0, 1, 1], [], []>} : vector<16x16xbf16>, vector<16x16xbf16>, vector<16x16xf32> -> vector<16x16xf32>
      %37 = arith.truncf %36 : vector<16x16xf32> to vector<16x16xbf16>
      %cst_32 = arith.constant dense<0.000000e+00> : vector<16x16xf32>
      %38 = tpu.matmul %37, %1, %cst_32 {dimension_numbers = #tpu.dot_dimension_numbers<[1], [0], [0], [1], [0, 0, 1, 1], [], []>} : vector<16x16xbf16>, vector<16x16xbf16>, vector<16x16xf32> -> vector<16x16xf32>
      %39 = arith.truncf %38 : vector<16x16xf32> to vector<16x16xbf16>
      %c0_33 = arith.constant 0 : index
      %c0_34 = arith.constant 0 : index
      %40 = vector.load %arg7[%c0_33, %c0_34] : memref<48x16xbf16, #tpu.memory_space<vmem>>, vector<16x16xbf16>
      tpu.vector_store %arg7[%c0_33, %c0_34], %39 {strides = array<i32>} : memref<48x16xbf16, #tpu.memory_space<vmem>>, vector<16x16xbf16>,
      %c0_35 = arith.constant 0 : index
      %c16_36 = arith.constant 16 : index
      %c0_37 = arith.constant 0 : index
      %41 = vector.load %arg2[%c0_35, %c16_36, %c0_37] : memref<1x48x16xbf16, #tpu.memory_space<vmem>>, vector<1x16x16xbf16>
      %42 = vector.shape_cast %41 : vector<1x16x16xbf16> to vector<16x16xbf16>
      %cst_38 = arith.constant dense<0.000000e+00> : vector<16x16xf32>
      %43 = tpu.matmul %0, %42, %cst_38 {dimension_numbers = #tpu.dot_dimension_numbers<[1], [0], [0], [1], [0, 0, 1, 1], [], []>} : vector<16x16xbf16>, vector<16x16xbf16>, vector<16x16xf32> -> vector<16x16xf32>
      %44 = arith.truncf %43 : vector<16x16xf32> to vector<16x16xbf16>
      %cst_39 = arith.constant dense<0.000000e+00> : vector<16x16xf32>
      %45 = tpu.matmul %44, %1, %cst_39 {dimension_numbers = #tpu.dot_dimension_numbers<[1], [0], [0], [1], [0, 0, 1, 1], [], []>} : vector<16x16xbf16>, vector<16x16xbf16>, vector<16x16xf32> -> vector<16x16xf32>
      %46 = arith.truncf %45 : vector<16x16xf32> to vector<16x16xbf16>
      %c16_40 = arith.constant 16 : index
      %c0_41 = arith.constant 0 : index
      %47 = vector.load %arg7[%c16_40, %c0_41] : memref<48x16xbf16, #tpu.memory_space<vmem>>, vector<16x16xbf16>
      tpu.vector_store %arg7[%c16_40, %c0_41], %46 {strides = array<i32>} : memref<48x16xbf16, #tpu.memory_space<vmem>>, vector<16x16xbf16>,
      %c0_42 = arith.constant 0 : index
      %c32_43 = arith.constant 32 : index
      %c0_44 = arith.constant 0 : index
      %48 = vector.load %arg2[%c0_42, %c32_43, %c0_44] : memref<1x48x16xbf16, #tpu.memory_space<vmem>>, vector<1x16x16xbf16>
      %49 = vector.shape_cast %48 : vector<1x16x16xbf16> to vector<16x16xbf16>
      %cst_45 = arith.constant dense<0.000000e+00> : vector<16x16xf32>
      %50 = tpu.matmul %0, %49, %cst_45 {dimension_numbers = #tpu.dot_dimension_numbers<[1], [0], [0], [1], [0, 0, 1, 1], [], []>} : vector<16x16xbf16>, vector<16x16xbf16>, vector<16x16xf32> -> vector<16x16xf32>
      %51 = arith.truncf %50 : vector<16x16xf32> to vector<16x16xbf16>
      %cst_46 = arith.constant dense<0.000000e+00> : vector<16x16xf32>
      %52 = tpu.matmul %51, %1, %cst_46 {dimension_numbers = #tpu.dot_dimension_numbers<[1], [0], [0], [1], [0, 0, 1, 1], [], []>} : vector<16x16xbf16>, vector<16x16xbf16>, vector<16x16xf32> -> vector<16x16xf32>
      %53 = arith.truncf %52 : vector<16x16xf32> to vector<16x16xbf16>
      %c32_47 = arith.constant 32 : index
      %c0_48 = arith.constant 0 : index
      %54 = vector.load %arg7[%c32_47, %c0_48] : memref<48x16xbf16, #tpu.memory_space<vmem>>, vector<16x16xbf16>
      tpu.vector_store %arg7[%c32_47, %c0_48], %53 {strides = array<i32>} : memref<48x16xbf16, #tpu.memory_space<vmem>>, vector<16x16xbf16>,
    } else {
    }
    %c0_4 = arith.constant 0 : index
    %c0_5 = arith.constant 0 : index
    %c0_6 = arith.constant 0 : index
    %5 = vector.load %arg5[%c0_4, %c0_5, %c0_6] : memref<1x16x16xbf16, #tpu.memory_space<vmem>>, vector<1x16x16xbf16>
    %6 = vector.shape_cast %5 : vector<1x16x16xbf16> to vector<16x16xbf16>
    %c0_7 = arith.constant 0 : index
    %c0_8 = arith.constant 0 : index
    %7 = vector.load %arg7[%c0_7, %c0_8] : memref<48x16xbf16, #tpu.memory_space<vmem>>, vector<16x16xbf16>
    %8 = arith.mulf %6, %7 : vector<16x16xbf16>
    %cst = arith.constant dense<0.000000e+00> : vector<16x16xf32>
    %9 = tpu.matmul %1, %8, %cst {dimension_numbers = #tpu.dot_dimension_numbers<[1], [0], [0], [1], [0, 0, 1, 1], [], []>} : vector<16x16xbf16>, vector<16x16xbf16>, vector<16x16xf32> -> vector<16x16xf32>
    %10 = arith.truncf %9 : vector<16x16xf32> to vector<16x16xbf16>
    %cst_9 = arith.constant dense<0.000000e+00> : vector<16x16xf32>
    %11 = tpu.matmul %10, %0, %cst_9 {dimension_numbers = #tpu.dot_dimension_numbers<[1], [0], [0], [1], [0, 0, 1, 1], [], []>} : vector<16x16xbf16>, vector<16x16xbf16>, vector<16x16xf32> -> vector<16x16xf32>
    %12 = arith.truncf %11 : vector<16x16xf32> to vector<16x16xbf16>
    %c0_10 = arith.constant 0 : index
    %c0_11 = arith.constant 0 : index
    %c0_12 = arith.constant 0 : index
    %c0_13 = arith.constant 0 : index
    %13 = vector.load %arg6[%c0_10, %c0_11, %c0_12, %c0_13] : memref<1x1x48x16xbf16, #tpu.memory_space<vmem>>, vector<1x1x16x16xbf16>
    %14 = vector.shape_cast %13 : vector<1x1x16x16xbf16> to vector<16x16xbf16>
    %15 = vector.shape_cast %12 : vector<16x16xbf16> to vector<1x1x16x16xbf16>
    tpu.vector_store %arg6[%c0_10, %c0_11, %c0_12, %c0_13], %15 {strides = array<i32>} : memref<1x1x48x16xbf16, #tpu.memory_space<vmem>>, vector<1x1x16x16xbf16>,
    %c16 = arith.constant 16 : index
    %c0_14 = arith.constant 0 : index
    %16 = vector.load %arg7[%c16, %c0_14] : memref<48x16xbf16, #tpu.memory_space<vmem>>, vector<16x16xbf16>
    %17 = arith.mulf %6, %16 : vector<16x16xbf16>
    %cst_15 = arith.constant dense<0.000000e+00> : vector<16x16xf32>
    %18 = tpu.matmul %1, %17, %cst_15 {dimension_numbers = #tpu.dot_dimension_numbers<[1], [0], [0], [1], [0, 0, 1, 1], [], []>} : vector<16x16xbf16>, vector<16x16xbf16>, vector<16x16xf32> -> vector<16x16xf32>
    %19 = arith.truncf %18 : vector<16x16xf32> to vector<16x16xbf16>
    %cst_16 = arith.constant dense<0.000000e+00> : vector<16x16xf32>
    %20 = tpu.matmul %19, %0, %cst_16 {dimension_numbers = #tpu.dot_dimension_numbers<[1], [0], [0], [1], [0, 0, 1, 1], [], []>} : vector<16x16xbf16>, vector<16x16xbf16>, vector<16x16xf32> -> vector<16x16xf32>
    %21 = arith.truncf %20 : vector<16x16xf32> to vector<16x16xbf16>
    %c0_17 = arith.constant 0 : index
    %c0_18 = arith.constant 0 : index
    %c16_19 = arith.constant 16 : index
    %c0_20 = arith.constant 0 : index
    %22 = vector.load %arg6[%c0_17, %c0_18, %c16_19, %c0_20] : memref<1x1x48x16xbf16, #tpu.memory_space<vmem>>, vector<1x1x16x16xbf16>
    %23 = vector.shape_cast %22 : vector<1x1x16x16xbf16> to vector<16x16xbf16>
    %24 = vector.shape_cast %21 : vector<16x16xbf16> to vector<1x1x16x16xbf16>
    tpu.vector_store %arg6[%c0_17, %c0_18, %c16_19, %c0_20], %24 {strides = array<i32>} : memref<1x1x48x16xbf16, #tpu.memory_space<vmem>>, vector<1x1x16x16xbf16>,
    %c32 = arith.constant 32 : index
    %c0_21 = arith.constant 0 : index
    %25 = vector.load %arg7[%c32, %c0_21] : memref<48x16xbf16, #tpu.memory_space<vmem>>, vector<16x16xbf16>
    %26 = arith.mulf %6, %25 : vector<16x16xbf16>
    %cst_22 = arith.constant dense<0.000000e+00> : vector<16x16xf32>
    %27 = tpu.matmul %1, %26, %cst_22 {dimension_numbers = #tpu.dot_dimension_numbers<[1], [0], [0], [1], [0, 0, 1, 1], [], []>} : vector<16x16xbf16>, vector<16x16xbf16>, vector<16x16xf32> -> vector<16x16xf32>
    %28 = arith.truncf %27 : vector<16x16xf32> to vector<16x16xbf16>
    %cst_23 = arith.constant dense<0.000000e+00> : vector<16x16xf32>
    %29 = tpu.matmul %28, %0, %cst_23 {dimension_numbers = #tpu.dot_dimension_numbers<[1], [0], [0], [1], [0, 0, 1, 1], [], []>} : vector<16x16xbf16>, vector<16x16xbf16>, vector<16x16xf32> -> vector<16x16xf32>
    %30 = arith.truncf %29 : vector<16x16xf32> to vector<16x16xbf16>
    %c0_24 = arith.constant 0 : index
    %c0_25 = arith.constant 0 : index
    %c32_26 = arith.constant 32 : index
    %c0_27 = arith.constant 0 : index
    %31 = vector.load %arg6[%c0_24, %c0_25, %c32_26, %c0_27] : memref<1x1x48x16xbf16, #tpu.memory_space<vmem>>, vector<1x1x16x16xbf16>
    %32 = vector.shape_cast %31 : vector<1x1x16x16xbf16> to vector<16x16xbf16>
    %33 = vector.shape_cast %30 : vector<16x16xbf16> to vector<1x1x16x16xbf16>
    tpu.vector_store %arg6[%c0_24, %c0_25, %c32_26, %c0_27], %33 {strides = array<i32>} : memref<1x1x48x16xbf16, #tpu.memory_space<vmem>>, vector<1x1x16x16xbf16>,
    return
  }
  func.func @transform_0(%arg0: i32, %arg1: i32) -> (i32, i32, i32) {
    %c0_i32 = arith.constant 0 : i32
    %c0_i32_0 = arith.constant 0 : i32
    %c0_i32_1 = arith.constant 0 : i32
    return %arg0, %c0_i32, %c0_i32_0 : i32, i32, i32
  }
  func.func @transform_1(%arg0: i32, %arg1: i32) -> (i32, i32) {
    %c0_i32 = arith.constant 0 : i32
    %c0_i32_0 = arith.constant 0 : i32
    %c0_i32_1 = arith.constant 0 : i32
    return %c0_i32, %c0_i32_0 : i32, i32
  }
  func.func @transform_2(%arg0: i32, %arg1: i32) -> (i32, i32) {
    %c0_i32 = arith.constant 0 : i32
    %c0_i32_0 = arith.constant 0 : i32
    %c0_i32_1 = arith.constant 0 : i32
    return %c0_i32, %c0_i32_0 : i32, i32
  }
  func.func @transform_3(%arg0: i32, %arg1: i32) -> (i32, i32, i32) {
    %c0_i32 = arith.constant 0 : i32
    %c0_i32_0 = arith.constant 0 : i32
    %c0_i32_1 = arith.constant 0 : i32
    return %arg1, %c0_i32, %c0_i32_0 : i32, i32, i32
  }
  func.func @transform_4(%arg0: i32, %arg1: i32) -> (i32, i32, i32, i32) {
    %c0_i32 = arith.constant 0 : i32
    %c0_i32_0 = arith.constant 0 : i32
    %c0_i32_1 = arith.constant 0 : i32
    return %arg0, %arg1, %c0_i32, %c0_i32_0 : i32, i32, i32, i32
  }
}

</mosaic_0001>

<llo_original>
// kernel: fad_head.1
$region0: #{fad_head.1}
  #allocation0 [shape = 'u32[]', space=smem, size = 0x4, offset = 0x4, fixed_abs, tag = 'smem constant byte address 0x4 - core index']
  #allocation1 [shape = 'u32[72,128]{1,0:T(1,128)}', space=vmem, size = 0x9000, scoped, tag = 'internal scratch']
  #allocation2 [shape = 'bf16[48,16]{1,0:T(8,128)(2,1)}', space=vmem, size = 0x3000, scoped, tag = 'scratch operand']
  %s0 = inlined_call_operand.vmem [shape: bf16[2,48,16], index: 0, kind: input, shape index: {}]
  %s1 = inlined_call_operand.vmem [shape: bf16[16,16], index: 1, kind: input, shape index: {}]
  %s2 = inlined_call_operand.vmem [shape: bf16[16,16], index: 2, kind: input, shape index: {}]
  %s3 = inlined_call_operand.vmem [shape: bf16[4,16,16], index: 3, kind: input, shape index: {}]
  %s4 = inlined_call_operand.hbm [shape: bf16[2,4,48,16], index: 4, kind: output, shape index: {}]
  %s5 = sld [smem:[#allocation0]]
  $region53: #{fad_head.1} parent=0
    _
  %s7 = ssub.s32 1, %s5
  %s8 = scalar_select 0, %s7, %s5
  $region1: #{fad_head.1} parent=0
    #allocation3 [shape = 'u8[24576]{0}', space=vmem, size = 0x6000, scoped, tag = 'output window, operand 0']
    #allocation4 [shape = 's32[2]{0}', space=sflag, size = 0x8, scoped, tag = 'scoped memory for fad_head.1']
    %9 = vsyncpa [#allocation4], 0
    %s10 = scalar_lea.sflag [#allocation4], 1
    %11 = vsyncpa %s10, 0
    loop: start=0, step=1, limit=10
    $region2: #{fad_head.1} parent=1 // loop_pre_header
      _
    $region3: #{fad_head.1} parent=1 // loop_header
      %s13 = sphi 0, %s17
      %p14 = scmp.ge.s32.totalorder %s13, 10
      %s20 = sphi 0, %s32
      %s21 = sphi 0, %s28
      %s22 = sphi 0, %s20
      %s23 = sphi 0, %s21
      %s24 = sphi 0, %s22
      %s25 = sphi 0, %s23
      %s35 = sphi 0, %s37
      %s38 = sphi 0, %s35
      %s39 = sphi 0, %s38
      %s55 = sphi 0, %s39
      %s59 = sphi 0, %s59
      %s61 = sphi 0, %s59
      %s62 = sphi 0, %s61
      %s76 = sphi 0, %s62
      %s80 = sphi 0, %s80
      %s82 = sphi 0, %s80
      %s83 = sphi 0, %s82
      %s97 = sphi 0, %s83
      %s103 = sphi 0, %s105
      %s106 = sphi 0, %s103
      %s107 = sphi 0, %s106
      %s123 = sphi 0, %s107
      %s131 = sphi 0, %s133
      %s134 = sphi 0, %s131
      %s135 = sphi 0, %s134
      %s151 = sphi 0, %s135
    $region4: #{fad_head.1} parent=1 // loop_header_branch
      %16 = sbr.rel (%p14) target = $region8
    $region5: #{fad_head.1} parent=1 // loop_body
      %s18 = ssub.s32 %s13, 1
      %s19 = ssub.s32 %s13, 2
      %s26 = sadd.s32 1, %s21
      %p27 = scmp.ge.s32.totalorder %s26, 4
      %s28 = scalar_select %p27, 0, %s26
      %s29 = sadd.s32 1, %s20
      %s30 = scalar_select %p27, %s29, %s20
      %p31 = scmp.ge.s32.totalorder %s30, 2
      %s32 = scalar_select %p31, 0, %s30
      %s33 = ssub.s32 %s20, %s32
      %p34 = scmp.eq.s32.totalorder %s33, 0
      %s36 = sadd.s32 %s35, 1
      %s37 = scalar_select %p34, %s35, %s36
      %p40 = pneg %p34
      %p41 = scmp.eq.s32.totalorder %s13, 7
      %p42 = por %p40, %p41
      %p43 = scmp.ne.s32.totalorder %s35, %s38
      %p44 = scmp.eq.s32.totalorder %s13, 0
      %p45 = por %p43, %p44
      %p46 = scmp.ne.s32.totalorder %s35, %s38
      %p47 = scmp.eq.s32.totalorder %s18, 7
      %p48 = por %p46, %p47
      %p49 = scmp.ne.s32.totalorder %s38, %s39
      %p50 = scmp.eq.s32.totalorder %s18, 0
      %p51 = por %p49, %p50
      %p52 = scmp.ne.s32.totalorder %s38, %s39
      %p53 = scmp.eq.s32.totalorder %s19, 7
      %p54 = por %p52, %p53
      %p56 = scmp.ne.s32.totalorder %s39, %s55
      %p57 = scmp.eq.s32.totalorder %s19, 0
      %p58 = por %p56, %p57
      %s60 = sadd.s32 %s59, 1
      %p63 = scmp.eq.s32.totalorder %s13, 7
      %p64 = scmp.ne.s32.totalorder %s59, %s61
      %p65 = scmp.eq.s32.totalorder %s13, 0
      %p66 = por %p64, %p65
      %p67 = scmp.ne.s32.totalorder %s59, %s61
      %p68 = scmp.eq.s32.totalorder %s18, 7
      %p69 = por %p67, %p68
      %p70 = scmp.ne.s32.totalorder %s61, %s62
      %p71 = scmp.eq.s32.totalorder %s18, 0
      %p72 = por %p70, %p71
      %p73 = scmp.ne.s32.totalorder %s61, %s62
      %p74 = scmp.eq.s32.totalorder %s19, 7
      %p75 = por %p73, %p74
      %p77 = scmp.ne.s32.totalorder %s62, %s76
      %p78 = scmp.eq.s32.totalorder %s19, 0
      %p79 = por %p77, %p78
      %s81 = sadd.s32 %s80, 1
      %p84 = scmp.eq.s32.totalorder %s13, 7
      %p85 = scmp.ne.s32.totalorder %s80, %s82
      %p86 = scmp.eq.s32.totalorder %s13, 0
      %p87 = por %p85, %p86
      %p88 = scmp.ne.s32.totalorder %s80, %s82
      %p89 = scmp.eq.s32.totalorder %s18, 7
      %p90 = por %p88, %p89
      %p91 = scmp.ne.s32.totalorder %s82, %s83
      %p92 = scmp.eq.s32.totalorder %s18, 0
      %p93 = por %p91, %p92
      %p94 = scmp.ne.s32.totalorder %s82, %s83
      %p95 = scmp.eq.s32.totalorder %s19, 7
      %p96 = por %p94, %p95
      %p98 = scmp.ne.s32.totalorder %s83, %s97
      %p99 = scmp.eq.s32.totalorder %s19, 0
      %p100 = por %p98, %p99
      %s101 = ssub.s32 %s21, %s28
      %p102 = scmp.eq.s32.totalorder %s101, 0
      %s104 = sadd.s32 %s103, 1
      %s105 = scalar_select %p102, %s103, %s104
      %p108 = pneg %p102
      %p109 = scmp.eq.s32.totalorder %s13, 7
      %p110 = por %p108, %p109
      %p111 = scmp.ne.s32.totalorder %s103, %s106
      %p112 = scmp.eq.s32.totalorder %s13, 0
      %p113 = por %p111, %p112
      %p114 = scmp.ne.s32.totalorder %s103, %s106
      %p115 = scmp.eq.s32.totalorder %s18, 7
      %p116 = por %p114, %p115
      %p117 = scmp.ne.s32.totalorder %s106, %s107
      %p118 = scmp.eq.s32.totalorder %s18, 0
      %p119 = por %p117, %p118
      %p120 = scmp.ne.s32.totalorder %s106, %s107
      %p121 = scmp.eq.s32.totalorder %s19, 7
      %p122 = por %p120, %p121
      %p124 = scmp.ne.s32.totalorder %s107, %s123
      %p125 = scmp.eq.s32.totalorder %s19, 0
      %p126 = por %p124, %p125
      %s127 = ssub.s32 %s20, %s32
      %s128 = ssub.s32 %s21, %s28
      %s129 = sor.u32 %s127, %s128
      %p130 = scmp.eq.s32.totalorder %s129, 0
      %s132 = sadd.s32 %s131, 1
      %s133 = scalar_select %p130, %s131, %s132
      %p136 = pneg %p130
      %p137 = scmp.eq.s32.totalorder %s13, 7
      %p138 = por %p136, %p137
      %p139 = scmp.ne.s32.totalorder %s131, %s134
      %p140 = scmp.eq.s32.totalorder %s13, 0
      %p141 = por %p139, %p140
      %p142 = scmp.ne.s32.totalorder %s131, %s134
      %p143 = scmp.eq.s32.totalorder %s18, 7
      %p144 = por %p142, %p143
      %p145 = scmp.ne.s32.totalorder %s134, %s135
      %p146 = scmp.eq.s32.totalorder %s18, 0
      %p147 = por %p145, %p146
      %p148 = scmp.ne.s32.totalorder %s134, %s135
      %p149 = scmp.eq.s32.totalorder %s19, 7
      %p150 = por %p148, %p149
      %p152 = scmp.ne.s32.totalorder %s135, %s151
      %p153 = scmp.eq.s32.totalorder %s19, 0
      %p154 = por %p152, %p153
      %p155 = scmp.le.s32.totalorder 1, %s13
      %p156 = scmp.lt.s32.totalorder %s13, 9
      %p157 = pnand %p155, %p156
      %p158 = pneg %p157
      // Predicated region
      $region9: #{fad_head.1} parent=5 // pred_check
        _
      $region10: #{fad_head.1} parent=5 // pred_check_branch
        %160 = sbr.rel (%p157) target = $region12
      $region11: #{fad_head.1} parent=5 // pred_region
        %s161 = ssub.s32 %s13, 1
        // Predicated region
        $region13: #{fad_head.1} parent=11 // pred_check
          %p162 = pneg %p72
        $region14: #{fad_head.1} parent=11 // pred_check_branch
          %164 = sbr.rel (%p162) target = $region16
        $region15: #{fad_head.1} parent=11 // pred_region
          _
        $region16: #{fad_head.1} parent=11 // pred_fallthru
          _
        // Predicated region
        $region17: #{fad_head.1} parent=11 // pred_check
          %p165 = pneg %p93
        $region18: #{fad_head.1} parent=11 // pred_check_branch
          %167 = sbr.rel (%p165) target = $region20
        $region19: #{fad_head.1} parent=11 // pred_region
          _
        $region20: #{fad_head.1} parent=11 // pred_fallthru
          _
      $region12: #{fad_head.1} parent=5 // pred_fallthru
        _
      %p168 = scmp.lt.s32.totalorder %s13, 8
      // Predicated region
      $region21: #{fad_head.1} parent=5 // pred_check
        %p169 = pneg %p168
      $region22: #{fad_head.1} parent=5 // pred_check_branch
        %171 = sbr.rel (%p169) target = $region24
      $region23: #{fad_head.1} parent=5 // pred_region
        // Predicated region
        $region25: #{fad_head.1} parent=23 // pred_check
          %p172 = pneg %p45
        $region26: #{fad_head.1} parent=23 // pred_check_branch
          %174 = sbr.rel (%p172) target = $region28
        $region27: #{fad_head.1} parent=23 // pred_region
          %p175 = scmp.lt.s32.totalorder %s20, 1
          %s176 = scalar_select %p175, %s20, 1
          %s177 = smul.addr %s176, 6
          %s178 = smul.addr %s177, 4
          %s179 = scalar_lea.vmem %s0, %s178
        $region28: #{fad_head.1} parent=23 // pred_fallthru
          _
        // Predicated region
        $region29: #{fad_head.1} parent=23 // pred_check
          %p180 = pneg %p113
        $region30: #{fad_head.1} parent=23 // pred_check_branch
          %182 = sbr.rel (%p180) target = $region32
        $region31: #{fad_head.1} parent=23 // pred_region
          %p183 = scmp.lt.s32.totalorder %s21, 3
          %s184 = scalar_select %p183, %s21, 3
          %s185 = smul.addr %s184, 2
          %s186 = smul.addr %s185, 4
          %s187 = scalar_lea.vmem %s3, %s186
        $region32: #{fad_head.1} parent=23 // pred_fallthru
          _
      $region24: #{fad_head.1} parent=5 // pred_fallthru
        _
      %p188 = scmp.le.s32.totalorder 1, %s13
      %p189 = scmp.lt.s32.totalorder %s13, 9
      %p190 = pnand %p188, %p189
      %p191 = pneg %p190
      // Predicated region
      $region33: #{fad_head.1} parent=5 // pred_check
        _
      $region34: #{fad_head.1} parent=5 // pred_check_branch
        %193 = sbr.rel (%p190) target = $region36
      $region35: #{fad_head.1} parent=5 // pred_region
        %s194 = ssub.s32 %s13, 1
        %p195 = scmp.lt.s32.totalorder %s22, 1
        %s196 = scalar_select %p195, %s22, 1
        %s197 = smul.addr %s196, 6
        %s198 = smul.addr %s197, 4
        %s199 = scalar_lea.vmem %s0, %s198
        %p200 = pneg %p51
        %p201 = pneg %p48
        %p202 = pneg %p72
        %p203 = pneg %p69
        %p204 = pneg %p93
        %p205 = pneg %p90
        %p206 = scmp.lt.s32.totalorder %s23, 3
        %s207 = scalar_select %p206, %s23, 3
        %s208 = smul.addr %s207, 2
        %s209 = smul.addr %s208, 4
        %s210 = scalar_lea.vmem %s3, %s209
        %p211 = pneg %p119
        %p212 = pneg %p116
        %p213 = pneg %p147
        %p214 = pneg %p144
        %s215 = sand.u32 %s134, 1
        %s216 = scalar_lea.sflag [#allocation4], %s215
        %s217 = sand.u32 %s134, 1
        %s218 = smul.addr %s217, 24
        %s219 = scalar_lea.vmem [#allocation3], %s218
        %p220 = scmp.lt.s32.totalorder %s22, 1
        %s221 = scalar_select %p220, %s22, 1
        %s222 = smul.addr %s221, 6
        %s223 = smul.addr %s222, 4
        %s224 = scalar_lea.vmem %s0, %s223
        %p225 = scmp.lt.s32.totalorder %s23, 3
        %s226 = scalar_select %p225, %s23, 3
        %s227 = smul.addr %s226, 2
        %s228 = smul.addr %s227, 4
        %s229 = scalar_lea.vmem %s3, %s228
        %v231 = vld [vmem:[%s1] sm:$0xf]
        %v232 = vld [vmem:[%s1 + $0x4] sm:$0xf]
        %v233 = vld [vmem:[%s2] sm:$0xf]
        %v234 = vld [vmem:[%s2 + $0x4] sm:$0xf]
        %p235 = scmp.eq.s32.totalorder %s23, 0
        // Predicated region
        $region37: #{fad_head.1} parent=35 // pred_check
          %p236 = pneg %p235
        $region38: #{fad_head.1} parent=35 // pred_check_branch
          %238 = sbr.rel (%p236) target = $region40
        $region39: #{fad_head.1} parent=35 // pred_region
          %v239 = vld [vmem:[%s224] sm:$0xf]
          %v240 = vld [vmem:[%s224 + $0x4] sm:$0xf]
          %v243 = vunpack.c.l.b16 %v231
          %v244 = vunpack.c.l.b16 %v232
          %v245 = vpack.c.b16 %v244, %v243
          %v248 = vunpack.c.l.b16 %v239
          %v249 = vunpack.c.l.b16 %v240
          %v250 = vpack.c.b16 %v249, %v248
          %vm252 = vcmask 130048
          %v254 = vsel %vm252, %v245, 0
          %256 = vmatpush.bf16.msra.mxu0 0
          %257 = vmatpush.bf16.msra.mxu0 0
          %258 = vmatpush.bf16.msra.mxu0 0
          %259 = vmatpush.bf16.msra.mxu0 0
          %260 = vmatpush.bf16.msra.mxu0 0
          %261 = vmatpush.bf16.msra.mxu0 0
          %262 = vmatpush.bf16.msra.mxu0 0
          %263 = vmatpush.bf16.msra.mxu0 %v250
          %264 = vmatmul.bf16.gmra.mxu0 %v254
          %v265 = vpop.f32.mrf.mxu0
          %v266 = vadd.f32 0.0, %v265
          %v267 = vpop.f32.mrf.mxu0
          %v268 = vadd.f32 0.0, %v267
          %269 = vdwg.mxu0
          %v270 = vpack.c.bf16 %v268, %v266
          %v273 = vunpack.c.l.b16 %v233
          %v274 = vunpack.c.l.b16 %v234
          %v275 = vpack.c.b16 %v274, %v273
          %v278 = vsel %vm252, %v270, 0
          %280 = vmatpush.bf16.msra.mxu0 0
          %281 = vmatpush.bf16.msra.mxu0 0
          %282 = vmatpush.bf16.msra.mxu0 0
          %283 = vmatpush.bf16.msra.mxu0 0
          %284 = vmatpush.bf16.msra.mxu0 0
          %285 = vmatpush.bf16.msra.mxu0 0
          %286 = vmatpush.bf16.msra.mxu0 0
          %287 = vmatpush.bf16.msra.mxu0 %v275
          %288 = vmatmul.bf16.gmra.mxu0 %v278
          %v289 = vpop.f32.mrf.mxu0
          %v290 = vadd.f32 0.0, %v289
          %v291 = vpop.f32.mrf.mxu0
          %v292 = vadd.f32 0.0, %v291
          %293 = vdwg.mxu0
          %v294 = vpack.c.bf16 %v290, %v290
          %v295 = vpack.c.bf16 %v292, %v292
          %vm296 = vcmask 125952
          %297 = vst.msk [vmem:[#allocation2] sm:$0xf] %vm296, %v294
          %298 = vst.msk [vmem:[#allocation2 + $0x4] sm:$0xf] %vm296, %v295
          %v299 = vld [vmem:[%s224 + $0x8] sm:$0xf]
          %v300 = vld [vmem:[%s224 + $0xc] sm:$0xf]
          %v303 = vunpack.c.l.b16 %v299
          %v304 = vunpack.c.l.b16 %v300
          %v305 = vpack.c.b16 %v304, %v303
          %307 = vmatpush.bf16.msra.mxu0 0
          %308 = vmatpush.bf16.msra.mxu0 0
          %309 = vmatpush.bf16.msra.mxu0 0
          %310 = vmatpush.bf16.msra.mxu0 0
          %311 = vmatpush.bf16.msra.mxu0 0
          %312 = vmatpush.bf16.msra.mxu0 0
          %313 = vmatpush.bf16.msra.mxu0 0
          %314 = vmatpush.bf16.msra.mxu0 %v305
          %315 = vmatmul.bf16.gmra.mxu0 %v254
          %v316 = vpop.f32.mrf.mxu0
          %v317 = vadd.f32 0.0, %v316
          %v318 = vpop.f32.mrf.mxu0
          %v319 = vadd.f32 0.0, %v318
          %320 = vdwg.mxu0
          %v321 = vpack.c.bf16 %v319, %v317
          %v323 = vsel %vm252, %v321, 0
          %325 = vmatpush.bf16.msra.mxu0 0
          %326 = vmatpush.bf16.msra.mxu0 0
          %327 = vmatpush.bf16.msra.mxu0 0
          %328 = vmatpush.bf16.msra.mxu0 0
          %329 = vmatpush.bf16.msra.mxu0 0
          %330 = vmatpush.bf16.msra.mxu0 0
          %331 = vmatpush.bf16.msra.mxu0 0
          %332 = vmatpush.bf16.msra.mxu0 %v275
          %333 = vmatmul.bf16.gmra.mxu0 %v323
          %v334 = vpop.f32.mrf.mxu0
          %v335 = vadd.f32 0.0, %v334
          %v336 = vpop.f32.mrf.mxu0
          %v337 = vadd.f32 0.0, %v336
          %338 = vdwg.mxu0
          %v339 = vpack.c.bf16 %v335, %v335
          %v340 = vpack.c.bf16 %v337, %v337
          %341 = vst.msk [vmem:[#allocation2 + $0x8] sm:$0xf] %vm296, %v339
          %342 = vst.msk [vmem:[#allocation2 + $0xc] sm:$0xf] %vm296, %v340
          %v343 = vld [vmem:[%s224 + $0x10] sm:$0xf]
          %v344 = vld [vmem:[%s224 + $0x14] sm:$0xf]
          %v347 = vunpack.c.l.b16 %v343
          %v348 = vunpack.c.l.b16 %v344
          %v349 = vpack.c.b16 %v348, %v347
          %351 = vmatpush.bf16.msra.mxu0 0
          %352 = vmatpush.bf16.msra.mxu0 0
          %353 = vmatpush.bf16.msra.mxu0 0
          %354 = vmatpush.bf16.msra.mxu0 0
          %355 = vmatpush.bf16.msra.mxu0 0
          %356 = vmatpush.bf16.msra.mxu0 0
          %357 = vmatpush.bf16.msra.mxu0 0
          %358 = vmatpush.bf16.msra.mxu0 %v349
          %359 = vmatmul.bf16.gmra.mxu0 %v254
          %v360 = vpop.f32.mrf.mxu0
          %v361 = vadd.f32 0.0, %v360
          %v362 = vpop.f32.mrf.mxu0
          %v363 = vadd.f32 0.0, %v362
          %364 = vdwg.mxu0
          %v365 = vpack.c.bf16 %v363, %v361
          %v367 = vsel %vm252, %v365, 0
          %369 = vmatpush.bf16.msra.mxu0 0
          %370 = vmatpush.bf16.msra.mxu0 0
          %371 = vmatpush.bf16.msra.mxu0 0
          %372 = vmatpush.bf16.msra.mxu0 0
          %373 = vmatpush.bf16.msra.mxu0 0
          %374 = vmatpush.bf16.msra.mxu0 0
          %375 = vmatpush.bf16.msra.mxu0 0
          %376 = vmatpush.bf16.msra.mxu0 %v275
          %377 = vmatmul.bf16.gmra.mxu0 %v367
          %v378 = vpop.f32.mrf.mxu0
          %v379 = vadd.f32 0.0, %v378
          %v380 = vpop.f32.mrf.mxu0
          %v381 = vadd.f32 0.0, %v380
          %382 = vdwg.mxu0
          %v383 = vpack.c.bf16 %v379, %v379
          %v384 = vpack.c.bf16 %v381, %v381
          %385 = vst.msk [vmem:[#allocation2 + $0x10] sm:$0xf] %vm296, %v383
          %386 = vst.msk [vmem:[#allocation2 + $0x14] sm:$0xf] %vm296, %v384
        $region40: #{fad_head.1} parent=35 // pred_fallthru
          _
        %v387 = vld [vmem:[%s229] sm:$0xf]
        %v388 = vld [vmem:[%s229 + $0x4] sm:$0xf]
        %v389 = vld [vmem:[#allocation2] sm:$0xf]
        %v390 = vld [vmem:[#allocation2 + $0x4] sm:$0xf]
        %v391 = vunpack.c.l.bf16 %v387
        %v392 = vunpack.c.l.bf16 %v388
        %v393 = vunpack.c.l.bf16 %v389
        %v394 = vunpack.c.l.bf16 %v390
        %v395 = vmul.f32 %v391, %v393
        %v396 = vmul.f32 %v392, %v394
        %v397 = vpack.c.bf16 %v396, %v395
        %v400 = vunpack.c.l.b16 %v233
        %v401 = vunpack.c.l.b16 %v234
        %v402 = vpack.c.b16 %v401, %v400
        %vm403 = vcmask 130048
        %v405 = vsel %vm403, %v402, 0
        %407 = vmatpush.bf16.msra.mxu0 0
        %408 = vmatpush.bf16.msra.mxu0 0
        %409 = vmatpush.bf16.msra.mxu0 0
        %410 = vmatpush.bf16.msra.mxu0 0
        %411 = vmatpush.bf16.msra.mxu0 0
        %412 = vmatpush.bf16.msra.mxu0 0
        %413 = vmatpush.bf16.msra.mxu0 0
        %414 = vmatpush.bf16.msra.mxu0 %v397
        %415 = vmatmul.bf16.gmra.mxu0 %v405
        %v416 = vpop.f32.mrf.mxu0
        %v417 = vadd.f32 0.0, %v416
        %v418 = vpop.f32.mrf.mxu0
        %v419 = vadd.f32 0.0, %v418
        %420 = vdwg.mxu0
        %v421 = vpack.c.bf16 %v419, %v417
        %v424 = vunpack.c.l.b16 %v231
        %v425 = vunpack.c.l.b16 %v232
        %v426 = vpack.c.b16 %v425, %v424
        %v429 = vsel %vm403, %v421, 0
        %431 = vmatpush.bf16.msra.mxu0 0
        %432 = vmatpush.bf16.msra.mxu0 0
        %433 = vmatpush.bf16.msra.mxu0 0
        %434 = vmatpush.bf16.msra.mxu0 0
        %435 = vmatpush.bf16.msra.mxu0 0
        %436 = vmatpush.bf16.msra.mxu0 0
        %437 = vmatpush.bf16.msra.mxu0 0
        %438 = vmatpush.bf16.msra.mxu0 %v426
        %439 = vmatmul.bf16.gmra.mxu0 %v429
        %v440 = vpop.f32.mrf.mxu0
        %v441 = vadd.f32 0.0, %v440
        %v442 = vpop.f32.mrf.mxu0
        %v443 = vadd.f32 0.0, %v442
        %444 = vdwg.mxu0
        %v445 = vpack.c.bf16 %v441, %v441
        %v446 = vpack.c.bf16 %v443, %v443
        %vm447 = vcmask 125952
        %448 = vst.msk [vmem:[%s219] sm:$0xf] %vm447, %v445
        %449 = vst.msk [vmem:[%s219 + $0x4] sm:$0xf] %vm447, %v446
        %v450 = vld [vmem:[#allocation2 + $0x8] sm:$0xf]
        %v451 = vld [vmem:[#allocation2 + $0xc] sm:$0xf]
        %v452 = vunpack.c.l.bf16 %v450
        %v453 = vunpack.c.l.bf16 %v451
        %v454 = vmul.f32 %v391, %v452
        %v455 = vmul.f32 %v392, %v453
        %v456 = vpack.c.bf16 %v455, %v454
        %457 = vmatpush.bf16.msra.mxu0 0
        %458 = vmatpush.bf16.msra.mxu0 0
        %459 = vmatpush.bf16.msra.mxu0 0
        %460 = vmatpush.bf16.msra.mxu0 0
        %461 = vmatpush.bf16.msra.mxu0 0
        %462 = vmatpush.bf16.msra.mxu0 0
        %463 = vmatpush.bf16.msra.mxu0 0
        %464 = vmatpush.bf16.msra.mxu0 %v456
        %465 = vmatmul.bf16.gmra.mxu0 %v405
        %v466 = vpop.f32.mrf.mxu0
        %v467 = vadd.f32 0.0, %v466
        %v468 = vpop.f32.mrf.mxu0
        %v469 = vadd.f32 0.0, %v468
        %470 = vdwg.mxu0
        %v471 = vpack.c.bf16 %v469, %v467
        %v473 = vsel %vm403, %v471, 0
        %475 = vmatpush.bf16.msra.mxu0 0
        %476 = vmatpush.bf16.msra.mxu0 0
        %477 = vmatpush.bf16.msra.mxu0 0
        %478 = vmatpush.bf16.msra.mxu0 0
        %479 = vmatpush.bf16.msra.mxu0 0
        %480 = vmatpush.bf16.msra.mxu0 0
        %481 = vmatpush.bf16.msra.mxu0 0
        %482 = vmatpush.bf16.msra.mxu0 %v426
        %483 = vmatmul.bf16.gmra.mxu0 %v473
        %v484 = vpop.f32.mrf.mxu0
        %v485 = vadd.f32 0.0, %v484
        %v486 = vpop.f32.mrf.mxu0
        %v487 = vadd.f32 0.0, %v486
        %488 = vdwg.mxu0
        %v489 = vpack.c.bf16 %v485, %v485
        %v490 = vpack.c.bf16 %v487, %v487
        %491 = vst.msk [vmem:[%s219 + $0x8] sm:$0xf] %vm447, %v489
        %492 = vst.msk [vmem:[%s219 + $0xc] sm:$0xf] %vm447, %v490
        %v493 = vld [vmem:[#allocation2 + $0x10] sm:$0xf]
        %v494 = vld [vmem:[#allocation2 + $0x14] sm:$0xf]
        %v495 = vunpack.c.l.bf16 %v493
        %v496 = vunpack.c.l.bf16 %v494
        %v497 = vmul.f32 %v391, %v495
        %v498 = vmul.f32 %v392, %v496
        %v499 = vpack.c.bf16 %v498, %v497
        %500 = vmatpush.bf16.msra.mxu0 0
        %501 = vmatpush.bf16.msra.mxu0 0
        %502 = vmatpush.bf16.msra.mxu0 0
        %503 = vmatpush.bf16.msra.mxu0 0
        %504 = vmatpush.bf16.msra.mxu0 0
        %505 = vmatpush.bf16.msra.mxu0 0
        %506 = vmatpush.bf16.msra.mxu0 0
        %507 = vmatpush.bf16.msra.mxu0 %v499
        %508 = vmatmul.bf16.gmra.mxu0 %v405
        %v509 = vpop.f32.mrf.mxu0
        %v510 = vadd.f32 0.0, %v509
        %v511 = vpop.f32.mrf.mxu0
        %v512 = vadd.f32 0.0, %v511
        %513 = vdwg.mxu0
        %v514 = vpack.c.bf16 %v512, %v510
        %v516 = vsel %vm403, %v514, 0
        %518 = vmatpush.bf16.msra.mxu0 0
        %519 = vmatpush.bf16.msra.mxu0 0
        %520 = vmatpush.bf16.msra.mxu0 0
        %521 = vmatpush.bf16.msra.mxu0 0
        %522 = vmatpush.bf16.msra.mxu0 0
        %523 = vmatpush.bf16.msra.mxu0 0
        %524 = vmatpush.bf16.msra.mxu0 0
        %525 = vmatpush.bf16.msra.mxu0 %v426
        %526 = vmatmul.bf16.gmra.mxu0 %v516
        %v527 = vpop.f32.mrf.mxu0
        %v528 = vadd.f32 0.0, %v527
        %v529 = vpop.f32.mrf.mxu0
        %v530 = vadd.f32 0.0, %v529
        %531 = vdwg.mxu0
        %v532 = vpack.c.bf16 %v528, %v528
        %v533 = vpack.c.bf16 %v530, %v530
        %534 = vst.msk [vmem:[%s219 + $0x10] sm:$0xf] %vm447, %v532
        %535 = vst.msk [vmem:[%s219 + $0x14] sm:$0xf] %vm447, %v533
        %s536 = sand.u32 %s134, 1
        %s537 = scalar_lea.sflag [#allocation4], %s536
        %s538 = sand.u32 %s134, 1
        %s539 = smul.addr %s538, 24
        %s540 = scalar_lea.vmem [#allocation3], %s539
        // Predicated region
        $region41: #{fad_head.1} parent=35 // pred_check
          %p541 = pneg %p144
        $region42: #{fad_head.1} parent=35 // pred_check_branch
          %543 = sbr.rel (%p541) target = $region44
        $region43: #{fad_head.1} parent=35 // pred_region
          %545 = vsyncadd %s537, 0
          %s546 = smul.addr %s23, 6
          %s547 = smul.addr %s22, 24
          %s548 = sadd.s32 %s546, %s547
          %s549 = smul.addr %s548, 4
          %s550 = scalar_lea.hbm %s4, %s549
          %s551 = sshll.u32 %s540, 4
          %s552 = int_to_ptr.vmem [resolvable:$true] %s551
          %s553 = sshll.u32 %s550, 4
          %s554 = int_to_ptr.hbm [resolvable:$true] %s553
          %559 = dma.vmem_to_hbm [thread:$0]  %s552, 384, %s554, %s537, 64, 64, 4
        $region44: #{fad_head.1} parent=35 // pred_fallthru
          _
      $region36: #{fad_head.1} parent=5 // pred_fallthru
        _
      %p560 = scmp.le.s32.totalorder 2, %s13
      // Predicated region
      $region45: #{fad_head.1} parent=5 // pred_check
        %p561 = pneg %p560
      $region46: #{fad_head.1} parent=5 // pred_check_branch
        %563 = sbr.rel (%p561) target = $region48
      $region47: #{fad_head.1} parent=5 // pred_region
        %s564 = ssub.s32 %s13, 2
        // Predicated region
        $region49: #{fad_head.1} parent=47 // pred_check
          %p565 = pneg %p150
        $region50: #{fad_head.1} parent=47 // pred_check_branch
          %567 = sbr.rel (%p565) target = $region52
        $region51: #{fad_head.1} parent=47 // pred_region
          %s568 = sand.u32 %s135, 1
          %s569 = scalar_lea.sflag [#allocation4], %s568
          %s570 = sand.u32 %s135, 1
          %s571 = smul.addr %s570, 24
          %s572 = scalar_lea.vmem [#allocation3], %s571
          %574 = dma.done %s569, 384
        $region52: #{fad_head.1} parent=47 // pred_fallthru
          _
      $region48: #{fad_head.1} parent=5 // pred_fallthru
        _
    $region6: #{fad_head.1} parent=1 // loop_footer
      %s17 = sadd.s32 1, %s13
    $region7: #{fad_head.1} parent=1 // loop_footer_branch
      %12 = sbr.rel target = $region3
    $region8: #{fad_head.1} parent=1 // loop_exit
      _
    %575 = vsyncpa [#allocation4], 1
    %s576 = scalar_lea.sflag [#allocation4], 1
    %577 = vsyncpa %s576, 1

</llo_original>
